<compile_context>
chip_gen: v5e
topology: v5e:2x2
jax: 0.10.0
libtpu: 0.0.40
codegen_flags: <defaults>
</compile_context>

<pallas_src>
import functools

import jax
import jax.numpy as jnp
from jax.experimental import pallas as pl
from jax.experimental.pallas import tpu as pltpu


def _impute_kernel(x_ref, m_ref, alpha_ref, o_ref):
    # out = x + (1 - m) * alpha ; alpha (1, D) broadcasts over the (TB, D) tile.
    o_ref[...] = x_ref[...] + (1 - m_ref[...]) * alpha_ref[...]


def _choose_batch_tile(B, D, itemsize, vmem_budget_bytes=20 * 1024 * 1024):
    """Largest batch tile such that 3 streams x 2 pipeline buffers fit the budget."""
    per_row_bytes = 3 * 2 * D * itemsize  # x, m, out; each double-buffered
    tb = vmem_budget_bytes // max(per_row_bytes, 1)
    tb = min(tb, 2048)          # measured sweet spot: ~512-2048 rows
    tb = (tb // 8) * 8          # sublane (8) alignment for partial-B tiling
    tb = max(tb, 8)
    if tb >= B:
        return B                # full-dim block: always legal, single grid step
    return tb


def impute_missing(x, m, alpha, *, batch_tile=None):
    """Pallas TPU implementation of ImputeMissing.forward(x, m)."""
    B, D = x.shape
    dtype = x.dtype
    m = m.astype(dtype)
    alpha2d = alpha.reshape(1, D).astype(dtype)

    tb = batch_tile if batch_tile is not None else _choose_batch_tile(
        B, D, jnp.dtype(dtype).itemsize)
    tb = min(tb, B)
    grid = (pl.cdiv(B, tb),)

    # NOTE: when D is a multiple of 128 the output stores are already
    # lane-dense; for tiny D (like the demo) the op is negligible anyway.
    return pl.pallas_call(
        _impute_kernel,
        out_shape=jax.ShapeDtypeStruct((B, D), dtype),
        grid=grid,
        in_specs=[
            pl.BlockSpec((tb, D), lambda i: (i, 0)),   # x   : tiled over batch
            pl.BlockSpec((tb, D), lambda i: (i, 0)),   # m   : tiled over batch
            pl.BlockSpec((1, D), lambda i: (0, 0)),    # alpha: resident
        ],
        out_specs=pl.BlockSpec((tb, D), lambda i: (i, 0)),
        compiler_params=pltpu.CompilerParams(
            dimension_semantics=("parallel",),          # independent tiles
            vmem_limit_bytes=32 * 1024 * 1024,          # safe on v5e/v6e/v7x
        ),
    )(x, m, alpha2d)


if __name__ == "__main__":
    batch, input_size = 32, 64
    key = jax.random.PRNGKey(0)
    kx, km, ka = jax.random.split(key, 3)

    # Deterministic "init='norm', scale=0.1" parameter.
    alpha = 0.1 * jax.random.normal(ka, (input_size,), dtype=jnp.float32)

    x = jax.random.normal(kx, (batch, input_size), dtype=jnp.float32)
    # Binary mask (1 = observed, 0 = missing); missing entries zeroed in x,
    # matching how the module is used (x pre-masked upstream).
    m = (jax.random.uniform(km, (batch, input_size)) > 0.3).astype(jnp.float32)
    x = x * m

    # Use a small explicit batch tile so the demo exercises the multi-step,
    # pipelined grid path (grid = (4,)).
    fn = jax.jit(functools.partial(impute_missing, batch_tile=8))
    out = fn(x, m, alpha)
    jax.block_until_ready(out)

    # Reference check in plain JAX.
    ref = x + (1.0 - m) * alpha[None, :]
    assert jnp.allclose(out, ref, atol=1e-6), "mismatch vs reference"

    print("KERNEL_OK")
</pallas_src>

<mosaic_0001>
module attributes {stable_mosaic.version = 11 : i64} {
  func.func @_impute_kernel(%arg0: i32, %arg1: memref<8x64xf32, #tpu.memory_space<vmem>>, %arg2: memref<8x64xf32, #tpu.memory_space<vmem>>, %arg3: memref<1x64xf32, #tpu.memory_space<vmem>>, %arg4: memref<8x64xf32, #tpu.memory_space<vmem>>) attributes {dimension_semantics = [#tpu.dimension_semantics<parallel>], iteration_bounds = array<i64: 4>, scalar_prefetch = 0 : i64, scratch_operands = 0 : i64, tpu.core_type = #tpu.core_type<tc>, window_params = [{transform_indices = @transform_0, window_bounds = array<i64: 8, 64>}, {transform_indices = @transform_1, window_bounds = array<i64: 8, 64>}, {pipeline_mode = #tpu.pipeline_mode<synchronous>, transform_indices = @transform_2, window_bounds = array<i64: 1, 64>}, {transform_indices = @transform_3, window_bounds = array<i64: 8, 64>}]} {
    %c0 = arith.constant 0 : index
    %c0_0 = arith.constant 0 : index
    %0 = vector.load %arg1[%c0, %c0_0] : memref<8x64xf32, #tpu.memory_space<vmem>>, vector<8x64xf32>
    %c0_1 = arith.constant 0 : index
    %c0_2 = arith.constant 0 : index
    %1 = vector.load %arg2[%c0_1, %c0_2] : memref<8x64xf32, #tpu.memory_space<vmem>>, vector<8x64xf32>
    %cst = arith.constant 1.000000e+00 : f32
    %2 = vector.broadcast %cst : f32 to vector<8x64xf32>
    %3 = arith.subf %2, %1 : vector<8x64xf32>
    %c0_3 = arith.constant 0 : index
    %c0_4 = arith.constant 0 : index
    %4 = vector.load %arg3[%c0_3, %c0_4] : memref<1x64xf32, #tpu.memory_space<vmem>>, vector<1x64xf32>
    %5 = vector.broadcast %4 : vector<1x64xf32> to vector<8x64xf32>
    %6 = arith.mulf %3, %5 : vector<8x64xf32>
    %7 = arith.addf %0, %6 : vector<8x64xf32>
    %c0_5 = arith.constant 0 : index
    %c0_6 = arith.constant 0 : index
    %8 = vector.load %arg4[%c0_5, %c0_6] : memref<8x64xf32, #tpu.memory_space<vmem>>, vector<8x64xf32>
    tpu.vector_store %arg4[%c0_5, %c0_6], %7 {strides = array<i32>} : memref<8x64xf32, #tpu.memory_space<vmem>>, vector<8x64xf32>,
    return
  }
  func.func @transform_0(%arg0: i32) -> (i32, i32) {
    %c0_i32 = arith.constant 0 : i32
    %c0_i32_0 = arith.constant 0 : i32
    return %arg0, %c0_i32 : i32, i32
  }
  func.func @transform_1(%arg0: i32) -> (i32, i32) {
    %c0_i32 = arith.constant 0 : i32
    %c0_i32_0 = arith.constant 0 : i32
    return %arg0, %c0_i32 : i32, i32
  }
  func.func @transform_2(%arg0: i32) -> (i32, i32) {
    %c0_i32 = arith.constant 0 : i32
    %c0_i32_0 = arith.constant 0 : i32
    %c0_i32_1 = arith.constant 0 : i32
    return %c0_i32, %c0_i32_0 : i32, i32
  }
  func.func @transform_3(%arg0: i32) -> (i32, i32) {
    %c0_i32 = arith.constant 0 : i32
    %c0_i32_0 = arith.constant 0 : i32
    return %arg0, %c0_i32 : i32, i32
  }
}

</mosaic_0001>

<llo_original>
// kernel: impute_missing.1
$region0: #{impute_missing.1}
  #allocation0 [shape = 'u32[]', space=smem, size = 0x4, offset = 0x4, fixed_abs, tag = 'smem constant byte address 0x4 - core index']
  #allocation1 [shape = 'u32[72,128]{1,0:T(1,128)}', space=vmem, size = 0x9000, scoped, tag = 'internal scratch']
  %s0 = inlined_call_operand.hbm [shape: f32[32,64], index: 0, kind: input, shape index: {}]
  %s1 = inlined_call_operand.hbm [shape: f32[32,64], index: 1, kind: input, shape index: {}]
  %s2 = inlined_call_operand.vmem [shape: f32[1,64], index: 2, kind: input, shape index: {}]
  %s3 = inlined_call_operand.hbm [shape: f32[32,64], index: 3, kind: output, shape index: {}]
  %s4 = sld [smem:[#allocation0]]
  $region53: #{impute_missing.1} parent=0
    _
  %s6 = ssub.s32 1, %s4
  %s7 = scalar_select 0, %s6, %s4
  $region1: #{impute_missing.1} parent=0
    #allocation2 [shape = 'u8[8192]{0}', space=vmem, size = 0x2000, scoped, tag = 'input window, operand 0']
    #allocation3 [shape = 's32[2]{0}', space=sflag, size = 0x8, scoped, tag = 'scoped memory for impute_missing.1']
    #allocation4 [shape = 's32[2]{0}', space=sflag, size = 0x8, scoped, tag = 'scoped memory for impute_missing.1']
    #allocation5 [shape = 'u8[8192]{0}', space=vmem, size = 0x2000, scoped, tag = 'input window, operand 1']
    #allocation6 [shape = 's32[2]{0}', space=sflag, size = 0x8, scoped, tag = 'scoped memory for impute_missing.1']
    #allocation7 [shape = 'u8[8192]{0}', space=vmem, size = 0x2000, scoped, tag = 'output window, operand 0']
    %8 = vsyncpa [#allocation3], 0
    %s9 = scalar_lea.sflag [#allocation3], 1
    %10 = vsyncpa %s9, 0
    %11 = vsyncpa [#allocation6], 0
    %s12 = scalar_lea.sflag [#allocation6], 1
    %13 = vsyncpa %s12, 0
    %14 = vsyncpa [#allocation4], 0
    %s15 = scalar_lea.sflag [#allocation4], 1
    %16 = vsyncpa %s15, 0
    loop: start=0, step=1, limit=6
    $region2: #{impute_missing.1} parent=1 // loop_pre_header
      _
    $region3: #{impute_missing.1} parent=1 // loop_header
      %s18 = sphi 0, %s22
      %p19 = scmp.ge.s32.totalorder %s18, 6
      %s28 = sphi 0, %s30
      %s31 = sphi 0, %s28
      %s32 = sphi 0, %s31
      %s48 = sphi 0, %s32
      %s54 = sphi 0, %s56
      %s57 = sphi 0, %s54
      %s58 = sphi 0, %s57
      %s74 = sphi 0, %s58
      %s78 = sphi 0, %s78
      %s80 = sphi 0, %s78
      %s81 = sphi 0, %s80
      %s95 = sphi 0, %s81
      %s101 = sphi 0, %s103
      %s104 = sphi 0, %s101
      %s105 = sphi 0, %s104
      %s121 = sphi 0, %s105
    $region4: #{impute_missing.1} parent=1 // loop_header_branch
      %21 = sbr.rel (%p19) target = $region8
    $region5: #{impute_missing.1} parent=1 // loop_body
      %s23 = ssub.s32 %s18, 1
      %s24 = ssub.s32 %s18, 2
      %s25 = sadd.s32 %s18, 1
      %s26 = ssub.s32 %s18, %s25
      %p27 = scmp.eq.s32.totalorder %s26, 0
      %s29 = sadd.s32 %s28, 1
      %s30 = scalar_select %p27, %s28, %s29
      %p33 = pneg %p27
      %p34 = scmp.eq.s32.totalorder %s18, 3
      %p35 = por %p33, %p34
      %p36 = scmp.ne.s32.totalorder %s28, %s31
      %p37 = scmp.eq.s32.totalorder %s18, 0
      %p38 = por %p36, %p37
      %p39 = scmp.ne.s32.totalorder %s28, %s31
      %p40 = scmp.eq.s32.totalorder %s23, 3
      %p41 = por %p39, %p40
      %p42 = scmp.ne.s32.totalorder %s31, %s32
      %p43 = scmp.eq.s32.totalorder %s23, 0
      %p44 = por %p42, %p43
      %p45 = scmp.ne.s32.totalorder %s31, %s32
      %p46 = scmp.eq.s32.totalorder %s24, 3
      %p47 = por %p45, %p46
      %p49 = scmp.ne.s32.totalorder %s32, %s48
      %p50 = scmp.eq.s32.totalorder %s24, 0
      %p51 = por %p49, %p50
      %s52 = ssub.s32 %s18, %s25
      %p53 = scmp.eq.s32.totalorder %s52, 0
      %s55 = sadd.s32 %s54, 1
      %s56 = scalar_select %p53, %s54, %s55
      %p59 = pneg %p53
      %p60 = scmp.eq.s32.totalorder %s18, 3
      %p61 = por %p59, %p60
      %p62 = scmp.ne.s32.totalorder %s54, %s57
      %p63 = scmp.eq.s32.totalorder %s18, 0
      %p64 = por %p62, %p63
      %p65 = scmp.ne.s32.totalorder %s54, %s57
      %p66 = scmp.eq.s32.totalorder %s23, 3
      %p67 = por %p65, %p66
      %p68 = scmp.ne.s32.totalorder %s57, %s58
      %p69 = scmp.eq.s32.totalorder %s23, 0
      %p70 = por %p68, %p69
      %p71 = scmp.ne.s32.totalorder %s57, %s58
      %p72 = scmp.eq.s32.totalorder %s24, 3
      %p73 = por %p71, %p72
      %p75 = scmp.ne.s32.totalorder %s58, %s74
      %p76 = scmp.eq.s32.totalorder %s24, 0
      %p77 = por %p75, %p76
      %s79 = sadd.s32 %s78, 1
      %p82 = scmp.eq.s32.totalorder %s18, 3
      %p83 = scmp.ne.s32.totalorder %s78, %s80
      %p84 = scmp.eq.s32.totalorder %s18, 0
      %p85 = por %p83, %p84
      %p86 = scmp.ne.s32.totalorder %s78, %s80
      %p87 = scmp.eq.s32.totalorder %s23, 3
      %p88 = por %p86, %p87
      %p89 = scmp.ne.s32.totalorder %s80, %s81
      %p90 = scmp.eq.s32.totalorder %s23, 0
      %p91 = por %p89, %p90
      %p92 = scmp.ne.s32.totalorder %s80, %s81
      %p93 = scmp.eq.s32.totalorder %s24, 3
      %p94 = por %p92, %p93
      %p96 = scmp.ne.s32.totalorder %s81, %s95
      %p97 = scmp.eq.s32.totalorder %s24, 0
      %p98 = por %p96, %p97
      %s99 = ssub.s32 %s18, %s25
      %p100 = scmp.eq.s32.totalorder %s99, 0
      %s102 = sadd.s32 %s101, 1
      %s103 = scalar_select %p100, %s101, %s102
      %p106 = pneg %p100
      %p107 = scmp.eq.s32.totalorder %s18, 3
      %p108 = por %p106, %p107
      %p109 = scmp.ne.s32.totalorder %s101, %s104
      %p110 = scmp.eq.s32.totalorder %s18, 0
      %p111 = por %p109, %p110
      %p112 = scmp.ne.s32.totalorder %s101, %s104
      %p113 = scmp.eq.s32.totalorder %s23, 3
      %p114 = por %p112, %p113
      %p115 = scmp.ne.s32.totalorder %s104, %s105
      %p116 = scmp.eq.s32.totalorder %s23, 0
      %p117 = por %p115, %p116
      %p118 = scmp.ne.s32.totalorder %s104, %s105
      %p119 = scmp.eq.s32.totalorder %s24, 3
      %p120 = por %p118, %p119
      %p122 = scmp.ne.s32.totalorder %s105, %s121
      %p123 = scmp.eq.s32.totalorder %s24, 0
      %p124 = por %p122, %p123
      %p125 = scmp.le.s32.totalorder 1, %s18
      %p126 = scmp.lt.s32.totalorder %s18, 5
      %p127 = pnand %p125, %p126
      %p128 = pneg %p127
      // Predicated region
      $region9: #{impute_missing.1} parent=5 // pred_check
        _
      $region10: #{impute_missing.1} parent=5 // pred_check_branch
        %130 = sbr.rel (%p127) target = $region12
      $region11: #{impute_missing.1} parent=5 // pred_region
        %s131 = ssub.s32 %s18, 1
        // Predicated region
        $region13: #{impute_missing.1} parent=11 // pred_check
          %p132 = pneg %p91
        $region14: #{impute_missing.1} parent=11 // pred_check_branch
          %134 = sbr.rel (%p132) target = $region16
        $region15: #{impute_missing.1} parent=11 // pred_region
          _
        $region16: #{impute_missing.1} parent=11 // pred_fallthru
          _
      $region12: #{impute_missing.1} parent=5 // pred_fallthru
        _
      %p135 = scmp.lt.s32.totalorder %s18, 4
      // Predicated region
      $region17: #{impute_missing.1} parent=5 // pred_check
        %p136 = pneg %p135
      $region18: #{impute_missing.1} parent=5 // pred_check_branch
        %138 = sbr.rel (%p136) target = $region20
      $region19: #{impute_missing.1} parent=5 // pred_region
        // Predicated region
        $region21: #{impute_missing.1} parent=19 // pred_check
          %p139 = pneg %p38
        $region22: #{impute_missing.1} parent=19 // pred_check_branch
          %141 = sbr.rel (%p139) target = $region24
        $region23: #{impute_missing.1} parent=19 // pred_region
          %s142 = sand.u32 %s28, 1
          %s143 = scalar_lea.sflag [#allocation3], %s142
          %s144 = sand.u32 %s28, 1
          %s145 = smul.addr %s144, 8
          %s146 = scalar_lea.vmem [#allocation2], %s145
          %148 = vsyncadd %s143, 0
          %s149 = smul.addr %s18, 8
          %s150 = scalar_lea.hbm %s0, %s149
          %s152 = sshll.u32 %s150, 4
          %s153 = int_to_ptr.hbm [resolvable:$true] %s152
          %s154 = sshll.u32 %s146, 4
          %s155 = int_to_ptr.vmem [resolvable:$true] %s154
          %157 = dma.hbm_to_vmem [thread:$0]  %s153, 128, %s155, %s143
        $region24: #{impute_missing.1} parent=19 // pred_fallthru
          _
        // Predicated region
        $region25: #{impute_missing.1} parent=19 // pred_check
          %p158 = pneg %p64
        $region26: #{impute_missing.1} parent=19 // pred_check_branch
          %160 = sbr.rel (%p158) target = $region28
        $region27: #{impute_missing.1} parent=19 // pred_region
          %s161 = sand.u32 %s54, 1
          %s162 = scalar_lea.sflag [#allocation6], %s161
          %s163 = sand.u32 %s54, 1
          %s164 = smul.addr %s163, 8
          %s165 = scalar_lea.vmem [#allocation5], %s164
          %167 = vsyncadd %s162, 0
          %s168 = smul.addr %s18, 8
          %s169 = scalar_lea.hbm %s1, %s168
          %s171 = sshll.u32 %s169, 4
          %s172 = int_to_ptr.hbm [resolvable:$true] %s171
          %s173 = sshll.u32 %s165, 4
          %s174 = int_to_ptr.vmem [resolvable:$true] %s173
          %176 = dma.hbm_to_vmem [thread:$0]  %s172, 128, %s174, %s162
        $region28: #{impute_missing.1} parent=19 // pred_fallthru
          _
      $region20: #{impute_missing.1} parent=5 // pred_fallthru
        _
      %p177 = scmp.le.s32.totalorder 1, %s18
      %p178 = scmp.lt.s32.totalorder %s18, 5
      %p179 = pnand %p177, %p178
      %p180 = pneg %p179
      // Predicated region
      $region29: #{impute_missing.1} parent=5 // pred_check
        _
      $region30: #{impute_missing.1} parent=5 // pred_check_branch
        %182 = sbr.rel (%p179) target = $region32
      $region31: #{impute_missing.1} parent=5 // pred_region
        %s183 = ssub.s32 %s18, 1
        %s184 = sand.u32 %s31, 1
        %s185 = scalar_lea.sflag [#allocation3], %s184
        %s186 = sand.u32 %s31, 1
        %s187 = smul.addr %s186, 8
        %s188 = scalar_lea.vmem [#allocation2], %s187
        // Predicated region
        $region33: #{impute_missing.1} parent=31 // pred_check
          %p189 = pneg %p44
        $region34: #{impute_missing.1} parent=31 // pred_check_branch
          %191 = sbr.rel (%p189) target = $region36
        $region35: #{impute_missing.1} parent=31 // pred_region
          %193 = dma.done %s185, 128
        $region36: #{impute_missing.1} parent=31 // pred_fallthru
          _
        %s194 = sand.u32 %s57, 1
        %s195 = scalar_lea.sflag [#allocation6], %s194
        %s196 = sand.u32 %s57, 1
        %s197 = smul.addr %s196, 8
        %s198 = scalar_lea.vmem [#allocation5], %s197
        // Predicated region
        $region37: #{impute_missing.1} parent=31 // pred_check
          %p199 = pneg %p70
        $region38: #{impute_missing.1} parent=31 // pred_check_branch
          %201 = sbr.rel (%p199) target = $region40
        $region39: #{impute_missing.1} parent=31 // pred_region
          %203 = dma.done %s195, 128
        $region40: #{impute_missing.1} parent=31 // pred_fallthru
          _
        %s204 = sand.u32 %s31, 1
        %s205 = scalar_lea.sflag [#allocation3], %s204
        %s206 = sand.u32 %s31, 1
        %s207 = smul.addr %s206, 8
        %s208 = scalar_lea.vmem [#allocation2], %s207
        %p209 = pneg %p44
        %p210 = pneg %p41
        %s211 = sand.u32 %s57, 1
        %s212 = scalar_lea.sflag [#allocation6], %s211
        %s213 = sand.u32 %s57, 1
        %s214 = smul.addr %s213, 8
        %s215 = scalar_lea.vmem [#allocation5], %s214
        %p216 = pneg %p70
        %p217 = pneg %p67
        %p218 = pneg %p91
        %p219 = pneg %p88
        %p220 = pneg %p117
        %p221 = pneg %p114
        %s222 = sand.u32 %s104, 1
        %s223 = scalar_lea.sflag [#allocation4], %s222
        %s224 = sand.u32 %s104, 1
        %s225 = smul.addr %s224, 8
        %s226 = scalar_lea.vmem [#allocation7], %s225
        %v227 = vld [vmem:[%s188] sm:$0xff]
        %v228 = vld [vmem:[%s198] sm:$0xff]
        %v229 = vsub.f32 1.0, %v228
        %v230 = vld [vmem:[%s2] sm:$0x1]
        %v232 = vperm.slane %v230, 0
        %v234 = vmul.f32 %v229, %v232
        %v235 = vadd.f32 %v227, %v234
        %vm236 = vcmask 523264
        %237 = vst.msk [vmem:[%s226] sm:$0xff] %vm236, %v235
        %s238 = sand.u32 %s104, 1
        %s239 = scalar_lea.sflag [#allocation4], %s238
        %s240 = sand.u32 %s104, 1
        %s241 = smul.addr %s240, 8
        %s242 = scalar_lea.vmem [#allocation7], %s241
        // Predicated region
        $region41: #{impute_missing.1} parent=31 // pred_check
          %p243 = pneg %p114
        $region42: #{impute_missing.1} parent=31 // pred_check_branch
          %245 = sbr.rel (%p243) target = $region44
        $region43: #{impute_missing.1} parent=31 // pred_region
          %247 = vsyncadd %s239, 0
          %s248 = smul.addr %s23, 8
          %s249 = scalar_lea.hbm %s3, %s248
          %s251 = sshll.u32 %s242, 4
          %s252 = int_to_ptr.vmem [resolvable:$true] %s251
          %s253 = sshll.u32 %s249, 4
          %s254 = int_to_ptr.hbm [resolvable:$true] %s253
          %256 = dma.vmem_to_hbm [thread:$0]  %s252, 128, %s254, %s239
        $region44: #{impute_missing.1} parent=31 // pred_fallthru
          _
      $region32: #{impute_missing.1} parent=5 // pred_fallthru
        _
      %p257 = scmp.le.s32.totalorder 2, %s18
      // Predicated region
      $region45: #{impute_missing.1} parent=5 // pred_check
        %p258 = pneg %p257
      $region46: #{impute_missing.1} parent=5 // pred_check_branch
        %260 = sbr.rel (%p258) target = $region48
      $region47: #{impute_missing.1} parent=5 // pred_region
        %s261 = ssub.s32 %s18, 2
        // Predicated region
        $region49: #{impute_missing.1} parent=47 // pred_check
          %p262 = pneg %p120
        $region50: #{impute_missing.1} parent=47 // pred_check_branch
          %264 = sbr.rel (%p262) target = $region52
        $region51: #{impute_missing.1} parent=47 // pred_region
          %s265 = sand.u32 %s105, 1
          %s266 = scalar_lea.sflag [#allocation4], %s265
          %s267 = sand.u32 %s105, 1
          %s268 = smul.addr %s267, 8
          %s269 = scalar_lea.vmem [#allocation7], %s268
          %271 = dma.done %s266, 128
        $region52: #{impute_missing.1} parent=47 // pred_fallthru
          _
      $region48: #{impute_missing.1} parent=5 // pred_fallthru
        _
    $region6: #{impute_missing.1} parent=1 // loop_footer
      %s22 = sadd.s32 1, %s18
    $region7: #{impute_missing.1} parent=1 // loop_footer_branch
      %17 = sbr.rel target = $region3
    $region8: #{impute_missing.1} parent=1 // loop_exit
      _
    %272 = vsyncpa [#allocation3], 1
    %s273 = scalar_lea.sflag [#allocation3], 1
    %274 = vsyncpa %s273, 1
    %275 = vsyncpa [#allocation6], 1
    %s276 = scalar_lea.sflag [#allocation6], 1
    %277 = vsyncpa %s276, 1
    %278 = vsyncpa [#allocation4], 1
    %s279 = scalar_lea.sflag [#allocation4], 1
    %280 = vsyncpa %s279, 1

</llo_original>
